<compile_context>
chip_gen: v7x
topology: tpu7x:2x2x1
jax: 0.10.0
libtpu: 0.0.40
codegen_flags: <defaults>
</compile_context>

<pallas_src>
import math

import jax
import jax.numpy as jnp
from jax.experimental import pallas as pl
from jax.experimental.pallas import tpu as pltpu


LANE = 128
SUBLANE = 8
ROW_TILE_PREF = 256   # multiple of 128 -> fine on v5e, matches v6e/v7x MXU


def _round_up(n, m):
    return ((n + m - 1) // m) * m


def _row_tiling(n, pref=ROW_TILE_PREF):
    """Pick a row tile (multiple of 8) and the padded row count it divides."""
    if n >= pref:
        return pref, _round_up(n, pref)
    t = _round_up(max(n, SUBLANE), SUBLANE)
    return t, t


def _batch_tile(b, maxn, cp, nrel, vmem_budget=8 << 20):
    """Batch-row tile for the fused intra/combine kernel; keeps the double-
    buffered (nrel, tb, maxn, cp) neighbor block within a VMEM budget."""
    tile, bp = _row_tiling(b)
    per_row = nrel * maxn * cp * 4 * 2      # fp32, x2 double buffering
    cap = max(SUBLANE, (vmem_budget // max(per_row, 1)) // SUBLANE * SUBLANE)
    if tile > cap:
        tile = cap
        bp = _round_up(b, tile)
    return tile, bp


# --------------------------------------------------------------------------
# Kernel 1: fused  sim = relu(X @ W)  and  cos(sim, pos_emb[r]) for all r
# --------------------------------------------------------------------------

def _sim_scores_kernel(x_ref, w_ref, p_ref, sim_ref, sc_ref):
    # relu(X @ W) on the MXU, f32 accumulation.
    sim = jnp.maximum(
        jnp.dot(x_ref[...], w_ref[...], preferred_element_type=jnp.float32), 0.0)
    sim_ref[...] = sim.astype(sim_ref.dtype)

    # Cosine against every pos embedding as a normalized matmul (lane-dense out).
    # F.cosine_similarity semantics: denominator = max(||a|| * ||b||, eps).
    p = p_ref[...]                                               # (Cp, 128)
    dots = jnp.dot(sim, p, preferred_element_type=jnp.float32)   # (T, 128)
    rn = jnp.sqrt(jnp.sum(sim * sim, axis=-1, keepdims=True))    # (T, 1)
    pn = jnp.sqrt(jnp.sum(p * p, axis=0, keepdims=True))         # (1, 128)
    denom = jnp.maximum(rn * pn, 1e-8)
    sc_ref[...] = (dots * pl.reciprocal(denom, approx=True)).astype(sc_ref.dtype)


def sim_and_pos_scores(x, w, pos_embs):
    """sim = relu(x @ w); scores[i, r] = cosine(sim[i], pos_embs[r]).

    x: (R, F), w: (F, C), pos_embs: (NREL, C) with NREL <= 128.
    Returns padded arrays sim_p (Rp, Cp) and scores_p (Rp, 128); rows >= R and
    columns >= C / >= NREL are zero padding.
    """
    R, F = x.shape
    F2, C = w.shape
    assert F == F2
    nrel = pos_embs.shape[0]
    assert nrel <= LANE
    Fp = _round_up(F, LANE)
    Cp = _round_up(C, LANE)
    tile, Rp = _row_tiling(R)

    xp = jnp.pad(x, ((0, Rp - R), (0, Fp - F)))
    wp = jnp.pad(w, ((0, Fp - F), (0, Cp - C)))
    pm = jnp.zeros((Cp, LANE), jnp.float32).at[:C, :nrel].set(pos_embs.T)

    sim_p, scores_p = pl.pallas_call(
        _sim_scores_kernel,
        out_shape=(jax.ShapeDtypeStruct((Rp, Cp), jnp.float32),
                   jax.ShapeDtypeStruct((Rp, LANE), jnp.float32)),
        grid=(Rp // tile,),
        in_specs=[pl.BlockSpec((tile, Fp), lambda i: (i, 0)),
                  pl.BlockSpec((Fp, Cp), lambda i: (0, 0)),
                  pl.BlockSpec((Cp, LANE), lambda i: (0, 0))],
        out_specs=[pl.BlockSpec((tile, Cp), lambda i: (i, 0)),
                   pl.BlockSpec((tile, LANE), lambda i: (i, 0))],
        compiler_params=pltpu.CompilerParams(dimension_semantics=("parallel",)),
    )(xp, wp, pm)
    return sim_p, scores_p


# --------------------------------------------------------------------------
# Kernel 2: fused  masked-mean pooling over MAXN  +  relu(pooled @ W_intra[r])
#           +  final  relu([self | r1 | r2 | r3] @ weight)  (weight row-split)
# --------------------------------------------------------------------------

def _intra_combine_kernel(nb_ref, sw_ref, wi_ref, sf_ref, ws_ref, wr_ref, o_ref):
    nrel = nb_ref.shape[0]
    maxn = nb_ref.shape[2]
    # self-feature contribution of the final projection
    acc = jnp.dot(sf_ref[...], ws_ref[...], preferred_element_type=jnp.float32)
    for r in range(nrel):                      # static unroll (3 relations)
        nb = nb_ref[r]                         # (TB, MAXN, Cp)
        sw = sw_ref[r]                         # (TB, MAXN)
        # Masked weighted sum over the (small, static) neighbor-slot axis;
        # unrolled so every op stays 2D on (TB, Cp) vreg tiles.
        pooled = nb[:, 0, :] * sw[:, 0:1]
        for m in range(1, maxn):
            pooled = pooled + nb[:, m, :] * sw[:, m:m + 1]
        rfeat = jnp.maximum(
            jnp.dot(pooled, wi_ref[r], preferred_element_type=jnp.float32), 0.0)
        acc = acc + jnp.dot(rfeat, wr_ref[r], preferred_element_type=jnp.float32)
    o_ref[...] = jnp.maximum(acc, 0.0).astype(o_ref.dtype)


def intra_and_combine(nb_sim, slot_w, w_intra, self_feats, w_self, w_rel):
    """relu( self@W_self + sum_r relu((sum_m slot_w[r,:,m]*nb_sim[r,:,m,:]) @ W_intra[r]) @ W_rel[r] ).

    nb_sim: (NREL, B, MAXN, Cp)  slot_w: (NREL, B, MAXN)
    w_intra: (NREL, C, E)        self_feats: (B, F)
    w_self: (F, Eo)              w_rel: (NREL, E, Eo)
    Returns (B, Eo).
    """
    nrel, B, maxn, Cp = nb_sim.shape
    C, E = w_intra.shape[1], w_intra.shape[2]
    F = self_feats.shape[1]
    Eo = w_self.shape[1]
    assert C <= Cp and w_rel.shape == (nrel, E, Eo)
    Ep = _round_up(E, LANE)
    Eop = _round_up(Eo, LANE)
    Fp = _round_up(F, LANE)
    tb, Bp = _batch_tile(B, maxn, Cp, nrel)

    nb_p = jnp.pad(nb_sim, ((0, 0), (0, Bp - B), (0, 0), (0, 0)))
    sw_p = jnp.pad(slot_w, ((0, 0), (0, Bp - B), (0, 0)))
    wi_p = jnp.pad(w_intra, ((0, 0), (0, Cp - C), (0, Ep - E)))
    sf_p = jnp.pad(self_feats, ((0, Bp - B), (0, Fp - F)))
    ws_p = jnp.pad(w_self, ((0, Fp - F), (0, Eop - Eo)))
    wr_p = jnp.pad(w_rel, ((0, 0), (0, Ep - E), (0, Eop - Eo)))

    out = pl.pallas_call(
        _intra_combine_kernel,
        out_shape=jax.ShapeDtypeStruct((Bp, Eop), jnp.float32),
        grid=(Bp // tb,),
        in_specs=[pl.BlockSpec((nrel, tb, maxn, Cp), lambda b: (0, b, 0, 0)),
                  pl.BlockSpec((nrel, tb, maxn), lambda b: (0, b, 0)),
                  pl.BlockSpec((nrel, Cp, Ep), lambda b: (0, 0, 0)),
                  pl.BlockSpec((tb, Fp), lambda b: (b, 0)),
                  pl.BlockSpec((Fp, Eop), lambda b: (0, 0)),
                  pl.BlockSpec((nrel, Ep, Eop), lambda b: (0, 0, 0))],
        out_specs=pl.BlockSpec((tb, Eop), lambda b: (b, 0)),
        compiler_params=pltpu.CompilerParams(dimension_semantics=("parallel",)),
    )(nb_p, sw_p, wi_p, sf_p, ws_p, wr_p)
    return out[:B, :Eo]


# --------------------------------------------------------------------------
# Glue helpers (plain JAX)
# --------------------------------------------------------------------------

def xavier_uniform(key, shape):
    fan_in, fan_out = shape
    a = math.sqrt(6.0 / (fan_in + fan_out))
    return jax.random.uniform(key, shape, jnp.float32, -a, a)


def rho_sample_mask(scores, mask, rho):
    """Keep the ceil(deg * rho) highest-scoring valid neighbors per node/relation."""
    counts = jnp.sum(mask, axis=-1)                    # (..., )
    k = jnp.ceil(counts * rho)
    neg = jnp.where(mask > 0, scores, -jnp.inf)
    order = jnp.argsort(-neg, axis=-1)
    ranks = jnp.argsort(order, axis=-1)                # 0 = best
    return (ranks < k[..., None]).astype(scores.dtype) * mask


# --------------------------------------------------------------------------
# InterAgg forward
# --------------------------------------------------------------------------

class InterAggPallas:
    def __init__(self, key, num_nodes, feat_dim, embed_dim, contra_dim,
                 extend_dim, maxn, rho, train_pos):
        self.feat_dim = feat_dim
        self.embed_dim = embed_dim
        self.contra_dim = contra_dim
        self.extend_dim = extend_dim
        self.maxn = maxn
        self.rho = rho
        self.train_pos = train_pos

        ks = jax.random.split(key, 8)
        # node feature "embedding table"
        self.features = jax.random.normal(ks[0], (num_nodes, feat_dim), jnp.float32)
        # nn.Parameter weight: (embed_dim*3 + feat_dim, embed_dim), xavier_uniform
        self.weight = xavier_uniform(ks[1], (embed_dim * 3 + feat_dim, embed_dim))
        # nn.Embedding(3, contra_dim): default N(0, 1)
        self.pos_embs = jax.random.normal(ks[2], (3, contra_dim), jnp.float32)
        # nn.Parameter rsimTrans: (extend_dim, contra_dim), xavier_uniform
        self.rsimTrans = xavier_uniform(ks[3], (extend_dim, contra_dim))
        # TODO(synk): the three IntraAgg submodules are external constructor
        # arguments (not defined in src/layers.py); stand-in per-relation
        # projection weights for a masked-mean intra aggregator.
        self.intra_w = [xavier_uniform(ks[4 + r], (contra_dim, embed_dim))
                        for r in range(3)]

    def forward(self, nodes, labels, adj, adj_mask, train_flag=True):
        del labels, train_flag  # only consumed by the external IntraAgg modules
        feats = self.features
        B = nodes.shape[0]
        P = self.train_pos.shape[0]
        F, C, E, MAXN = self.feat_dim, self.contra_dim, self.embed_dim, self.maxn
        NREL = 3

        # Single stacked gather of every feature row this forward touches:
        # [batch centers | positive train nodes | all 3 relations' neighbors].
        # (equivalent to the unique_nodes/id_mapping bookkeeping of the PyTorch
        #  code; duplicate rows just recompute an identical relu-projection.)
        # TODO(synk): the gather itself stays in XLA; an in-kernel gather via
        # PrefetchScalarGridSpec scalar-prefetched ids would save one HBM pass.
        nb_flat = adj.reshape(-1)                                       # (3*B*MAXN,)
        row_ids = jnp.concatenate([nodes, self.train_pos, nb_flat])
        x_rows = feats[row_ids]                                         # (R, F)
        n_nb = NREL * B * MAXN

        # Fused kernel 1: sim = relu(X @ rsimTrans[:F]) and cosine(sim, pos_emb[r])
        # for all 3 relations at once (lane-dense score slab).
        sim_p, scores_p = sim_and_pos_scores(x_rows, self.rsimTrans[:F],
                                             self.pos_embs)
        Cp = sim_p.shape[1]

        center_scores = scores_p[:B, :NREL]                             # (B, 3)
        pos_scores = scores_p[B:B + P, :NREL]                           # (P, 3)
        nb_scores = scores_p[B + P:B + P + n_nb, :NREL]
        nb_scores = nb_scores.reshape(NREL, B, MAXN, NREL)
        neigh_pos_scores = jnp.stack(
            [nb_scores[r, :, :, r] for r in range(NREL)], axis=0)       # (3,B,MAXN)
        neigh_pos_scores = neigh_pos_scores * adj_mask

        nb_sim = sim_p[B + P:B + P + n_nb, :].reshape(NREL, B, MAXN, Cp)

        # TODO(synk): center-vs-neighbor-origin cosine (r*_neigh_scores) is only
        # consumed by the external IntraAgg modules, so it is not computed here.

        # rho-threshold sampling: keep ceil(deg * rho) neighbors per node.
        samp_mask = rho_sample_mask(neigh_pos_scores, adj_mask, self.rho)
        cnt = jnp.maximum(jnp.sum(samp_mask, axis=-1, keepdims=True), 1.0)
        slot_w = samp_mask / cnt                                        # (3,B,MAXN)

        # TODO(synk): IntraAgg.forward is an external module; stand-in =
        # relu(masked-mean(sampled neighbor sim feats) @ W_intra), fused together
        # with the final relu(cat(self, r1, r2, r3) @ weight) projection into a
        # single Pallas kernel (weight split by row blocks, partial matmuls
        # accumulated in-register -> no r_feats / cat_feats HBM round-trip).
        w_stack = jnp.stack(self.intra_w, axis=0)                       # (3, C, E)
        self_feats = feats[nodes]                                       # (B, F)
        w_self = self.weight[:F]                                        # (F, E)
        w_rel = jnp.stack(
            [self.weight[F + r * E:F + (r + 1) * E] for r in range(NREL)],
            axis=0)                                                     # (3, E, E)
        combined_be = intra_and_combine(nb_sim, slot_w, w_stack,
                                        self_feats, w_self, w_rel)      # (B, E)
        combined = combined_be.T                                        # (E, B)

        # TODO(synk): the contrastive loss lives in the external IntraAgg modules;
        # stand-in scalar built from the same cosine scores the real loss consumes.
        feat_contra_loss = (jnp.mean(1.0 - pos_scores)
                            + jnp.mean(1.0 - center_scores))
        return combined, feat_contra_loss


# --------------------------------------------------------------------------
# Main
# --------------------------------------------------------------------------

if __name__ == "__main__":
    NUM_NODES = 40
    FEAT_DIM = 32
    EMBED_DIM = 32
    CONTRA_DIM = 16
    EXTEND_DIM = 64
    B = 8          # batch of center nodes
    MAXN = 4       # padded neighbors per node per relation
    RHO = 0.5

    key = jax.random.PRNGKey(0)
    k_mod, k_adj, k_nodes = jax.random.split(key, 3)

    train_pos = jnp.arange(6, dtype=jnp.int32)          # positive train nodes
    model = InterAggPallas(k_mod, NUM_NODES, FEAT_DIM, EMBED_DIM, CONTRA_DIM,
                           EXTEND_DIM, MAXN, RHO, train_pos)

    # deterministic batch nodes / labels / padded adjacency for 3 relations
    nodes = jnp.arange(B, dtype=jnp.int32) * 3 % NUM_NODES
    labels = jnp.zeros((B,), dtype=jnp.int32)
    adj = jax.random.randint(k_adj, (3, B, MAXN), 0, NUM_NODES, dtype=jnp.int32)
    counts = (jnp.arange(B) % 3) + 2                     # 2..4 valid neighbors
    adj_mask = jnp.broadcast_to(
        (jnp.arange(MAXN)[None, :] < counts[:, None]).astype(jnp.float32),
        (3, B, MAXN))

    combined, loss = model.forward(nodes, labels, adj, adj_mask, train_flag=True)
    jax.block_until_ready((combined, loss))

    assert combined.shape == (EMBED_DIM, B)
    assert loss.shape == ()
    print("KERNEL_OK")
</pallas_src>

<mosaic_0001>
module attributes {stable_mosaic.version = 11 : i64} {
  func.func @_sim_scores_kernel(%arg0: i32, %arg1: memref<112x128xf32, #tpu.memory_space<vmem>>, %arg2: memref<128x128xf32, #tpu.memory_space<vmem>>, %arg3: memref<128x128xf32, #tpu.memory_space<vmem>>, %arg4: memref<112x128xf32, #tpu.memory_space<vmem>>, %arg5: memref<112x128xf32, #tpu.memory_space<vmem>>) attributes {dimension_semantics = [#tpu.dimension_semantics<parallel>], iteration_bounds = array<i64: 1>, scalar_prefetch = 0 : i64, scratch_operands = 0 : i64, tpu.core_type = #tpu.core_type<tc>, window_params = [{transform_indices = @transform_0, window_bounds = array<i64: 112, 128>}, {pipeline_mode = #tpu.pipeline_mode<synchronous>, transform_indices = @transform_1, window_bounds = array<i64: 128, 128>}, {pipeline_mode = #tpu.pipeline_mode<synchronous>, transform_indices = @transform_2, window_bounds = array<i64: 128, 128>}, {transform_indices = @transform_3, window_bounds = array<i64: 112, 128>}, {transform_indices = @transform_4, window_bounds = array<i64: 112, 128>}]} {
    %c0 = arith.constant 0 : index
    %c0_0 = arith.constant 0 : index
    %0 = vector.load %arg1[%c0, %c0_0] : memref<112x128xf32, #tpu.memory_space<vmem>>, vector<112x128xf32>
    %c0_1 = arith.constant 0 : index
    %c0_2 = arith.constant 0 : index
    %1 = vector.load %arg2[%c0_1, %c0_2] : memref<128x128xf32, #tpu.memory_space<vmem>>, vector<128x128xf32>
    %cst = arith.constant dense<0.000000e+00> : vector<112x128xf32>
    %2 = tpu.matmul %0, %1, %cst {dimension_numbers = #tpu.dot_dimension_numbers<[1], [0], [0], [1], [0, 0, 1, 1], [], []>} : vector<112x128xf32>, vector<128x128xf32>, vector<112x128xf32> -> vector<112x128xf32>
    %cst_3 = arith.constant 0.000000e+00 : f32
    %3 = vector.broadcast %cst_3 : f32 to vector<112x128xf32>
    %4 = arith.maximumf %2, %3 : vector<112x128xf32>
    %c0_4 = arith.constant 0 : index
    %c0_5 = arith.constant 0 : index
    %5 = vector.load %arg4[%c0_4, %c0_5] : memref<112x128xf32, #tpu.memory_space<vmem>>, vector<112x128xf32>
    tpu.vector_store %arg4[%c0_4, %c0_5], %4 {strides = array<i32>} : memref<112x128xf32, #tpu.memory_space<vmem>>, vector<112x128xf32>,
    %c0_6 = arith.constant 0 : index
    %c0_7 = arith.constant 0 : index
    %6 = vector.load %arg3[%c0_6, %c0_7] : memref<128x128xf32, #tpu.memory_space<vmem>>, vector<128x128xf32>
    %cst_8 = arith.constant dense<0.000000e+00> : vector<112x128xf32>
    %7 = tpu.matmul %4, %6, %cst_8 {dimension_numbers = #tpu.dot_dimension_numbers<[1], [0], [0], [1], [0, 0, 1, 1], [], []>} : vector<112x128xf32>, vector<128x128xf32>, vector<112x128xf32> -> vector<112x128xf32>
    %8 = arith.mulf %4, %4 : vector<112x128xf32>
    %cst_9 = arith.constant dense<0.000000e+00> : vector<112xf32>
    %9 = vector.multi_reduction <add>, %8, %cst_9 [1] : vector<112x128xf32> to vector<112xf32>
    %10 = vector.shape_cast %9 : vector<112xf32> to vector<112x1xf32>
    %11 = math.sqrt %10 : vector<112x1xf32>
    %12 = arith.mulf %6, %6 : vector<128x128xf32>
    %cst_10 = arith.constant dense<0.000000e+00> : vector<128xf32>
    %13 = vector.multi_reduction <add>, %12, %cst_10 [0] : vector<128x128xf32> to vector<128xf32>
    %14 = vector.shape_cast %13 : vector<128xf32> to vector<1x128xf32>
    %15 = math.sqrt %14 : vector<1x128xf32>
    %16 = vector.broadcast %11 : vector<112x1xf32> to vector<112x128xf32>
    %17 = vector.broadcast %15 : vector<1x128xf32> to vector<112x128xf32>
    %18 = arith.mulf %16, %17 : vector<112x128xf32>
    %cst_11 = arith.constant 9.99999993E-9 : f32
    %19 = vector.broadcast %cst_11 : f32 to vector<112x128xf32>
    %20 = arith.maximumf %18, %19 : vector<112x128xf32>
    %21 = tpu.reciprocal %20 {approx = true} : vector<112x128xf32> -> vector<112x128xf32>
    %22 = arith.mulf %7, %21 : vector<112x128xf32>
    %c0_12 = arith.constant 0 : index
    %c0_13 = arith.constant 0 : index
    %23 = vector.load %arg5[%c0_12, %c0_13] : memref<112x128xf32, #tpu.memory_space<vmem>>, vector<112x128xf32>
    tpu.vector_store %arg5[%c0_12, %c0_13], %22 {strides = array<i32>} : memref<112x128xf32, #tpu.memory_space<vmem>>, vector<112x128xf32>,
    return
  }
  func.func @transform_0(%arg0: i32) -> (i32, i32) {
    %c0_i32 = arith.constant 0 : i32
    %c0_i32_0 = arith.constant 0 : i32
    return %arg0, %c0_i32 : i32, i32
  }
  func.func @transform_1(%arg0: i32) -> (i32, i32) {
    %c0_i32 = arith.constant 0 : i32
    %c0_i32_0 = arith.constant 0 : i32
    %c0_i32_1 = arith.constant 0 : i32
    return %c0_i32, %c0_i32_0 : i32, i32
  }
  func.func @transform_2(%arg0: i32) -> (i32, i32) {
    %c0_i32 = arith.constant 0 : i32
    %c0_i32_0 = arith.constant 0 : i32
    %c0_i32_1 = arith.constant 0 : i32
    return %c0_i32, %c0_i32_0 : i32, i32
  }
  func.func @transform_3(%arg0: i32) -> (i32, i32) {
    %c0_i32 = arith.constant 0 : i32
    %c0_i32_0 = arith.constant 0 : i32
    return %arg0, %c0_i32 : i32, i32
  }
  func.func @transform_4(%arg0: i32) -> (i32, i32) {
    %c0_i32 = arith.constant 0 : i32
    %c0_i32_0 = arith.constant 0 : i32
    return %arg0, %c0_i32 : i32, i32
  }
}

</mosaic_0001>

<llo_original>
// kernel: tpu_custom_call.1
$region0: #{tpu_custom_call.1}
  #allocation0 [shape = 'u32[]', space=smem, size = 0x4, offset = 0x4, fixed_abs, tag = 'smem constant byte address 0x4 - core index']
  #allocation1 [shape = 'u32[144,128]{1,0:T(1,128)}', space=vmem, size = 0x12000, scoped, tag = 'internal scratch']
  %s0 = inlined_call_operand.hbm [shape: f32[112,128], index: 0, kind: input, shape index: {}]
  %s1 = inlined_call_operand.hbm [shape: f32[128,128], index: 1, kind: input, shape index: {}]
  %s2 = inlined_call_operand.hbm [shape: f32[128,128], index: 2, kind: input, shape index: {}]
  %s3 = inlined_call_operand.hbm [shape: f32[112,128], index: 3, kind: output, shape index: {0}]
  %s4 = inlined_call_operand.hbm [shape: f32[112,128], index: 4, kind: output, shape index: {1}]
  %5 = xla_tuple %s3, %s4
  %s6 = sld [smem:[#allocation0]]
  $region42: #{tpu_custom_call.1} parent=0
    _
  %s8 = ssub.s32 1, %s6
  %s9 = scalar_select 0, %s8, %s6
  $region1: #{tpu_custom_call.1} parent=0
    #allocation2 [shape = 'u8[57344]{0}', space=vmem, size = 0xe000, scoped, tag = 'input window, operand 0, single buffered']
    #allocation3 [shape = 's32[1]{0}', space=sflag, size = 0x4, scoped, tag = 'scoped memory for tpu_custom_call.1']
    #allocation4 [shape = 's32[1]{0}', space=sflag, size = 0x4, scoped, tag = 'scoped memory for tpu_custom_call.1']
    #allocation5 [shape = 'u8[65536]{0}', space=vmem, size = 0x10000, scoped, tag = 'input window, operand 1, single buffered']
    #allocation6 [shape = 's32[1]{0}', space=sflag, size = 0x4, scoped, tag = 'scoped memory for tpu_custom_call.1']
    #allocation7 [shape = 'u8[65536]{0}', space=vmem, size = 0x10000, scoped, tag = 'input window, operand 2, single buffered']
    #allocation8 [shape = 'u8[57344]{0}', space=vmem, size = 0xe000, scoped, tag = 'output window, operand 0, single buffered']
    #allocation9 [shape = 'u8[57344]{0}', space=vmem, size = 0xe000, scoped, tag = 'output window, operand 1, single buffered']
    #allocation10 [shape = 's32[1]{0}', space=sflag, size = 0x4, scoped, tag = 'scoped memory for tpu_custom_call.1']
    %10 = vsyncpa [#allocation3], 0
    %11 = vsyncpa [#allocation6], 0
    %12 = vsyncpa [#allocation4], 0
    %13 = vsyncpa [#allocation10], 0
    // Predicated region
    $region2: #{tpu_custom_call.1} parent=1 // pred_check
      _
    $region3: #{tpu_custom_call.1} parent=1 // pred_check_branch
      %15 = sbr.rel (0) target = $region5
    $region4: #{tpu_custom_call.1} parent=1 // pred_region
      %s17 = ssub.s32 1792, 1792
      %18 = vsyncadd [#allocation3], %s17
      %s19 = sshll.u32 [#allocation2], 4
      %s20 = int_to_ptr.vmem [resolvable:$true] %s19
      %25 = dma.hbm_to_vmem [thread:$0]  %s0, 1792, %s20, [#allocation3], 128, 128, 8
    $region5: #{tpu_custom_call.1} parent=1 // pred_fallthru
      _
    // Predicated region
    $region6: #{tpu_custom_call.1} parent=1 // pred_check
      _
    $region7: #{tpu_custom_call.1} parent=1 // pred_check_branch
      %27 = sbr.rel (0) target = $region9
    $region8: #{tpu_custom_call.1} parent=1 // pred_region
      %s29 = ssub.s32 2048, 2048
      %30 = vsyncadd [#allocation6], %s29
      %s31 = sshll.u32 [#allocation5], 4
      %s32 = int_to_ptr.vmem [resolvable:$true] %s31
      %37 = dma.hbm_to_vmem [thread:$0]  %s1, 2048, %s32, [#allocation6], 128, 128, 8
    $region9: #{tpu_custom_call.1} parent=1 // pred_fallthru
      _
    // Predicated region
    $region10: #{tpu_custom_call.1} parent=1 // pred_check
      _
    $region11: #{tpu_custom_call.1} parent=1 // pred_check_branch
      %39 = sbr.rel (0) target = $region13
    $region12: #{tpu_custom_call.1} parent=1 // pred_region
      %s41 = ssub.s32 2048, 2048
      %42 = vsyncadd [#allocation6], %s41
      %s43 = sshll.u32 [#allocation7], 4
      %s44 = int_to_ptr.vmem [resolvable:$true] %s43
      %49 = dma.hbm_to_vmem [thread:$0]  %s2, 2048, %s44, [#allocation6], 128, 128, 8
    $region13: #{tpu_custom_call.1} parent=1 // pred_fallthru
      _
    // Predicated region
    $region14: #{tpu_custom_call.1} parent=1 // pred_check
      _
    $region15: #{tpu_custom_call.1} parent=1 // pred_check_branch
      %51 = sbr.rel (0) target = $region17
    $region16: #{tpu_custom_call.1} parent=1 // pred_region
      %52 = dma.done [#allocation3], 1792
    $region17: #{tpu_custom_call.1} parent=1 // pred_fallthru
      _
    // Predicated region
    $region18: #{tpu_custom_call.1} parent=1 // pred_check
      _
    $region19: #{tpu_custom_call.1} parent=1 // pred_check_branch
      %54 = sbr.rel (0) target = $region21
    $region20: #{tpu_custom_call.1} parent=1 // pred_region
      %55 = dma.done [#allocation6], 2048
    $region21: #{tpu_custom_call.1} parent=1 // pred_fallthru
      _
    // Predicated region
    $region22: #{tpu_custom_call.1} parent=1 // pred_check
      _
    $region23: #{tpu_custom_call.1} parent=1 // pred_check_branch
      %57 = sbr.rel (0) target = $region25
    $region24: #{tpu_custom_call.1} parent=1 // pred_region
      %58 = dma.done [#allocation6], 2048
    $region25: #{tpu_custom_call.1} parent=1 // pred_fallthru
      _
    %v59 = vld [vmem:[#allocation2] sm:$0xff]
    %v60 = vld [vmem:[#allocation2 + $0x8] sm:$0xff]
    %v61 = vld [vmem:[#allocation2 + $0x10] sm:$0xff]
    %v62 = vld [vmem:[#allocation2 + $0x18] sm:$0xff]
    %v63 = vld [vmem:[#allocation2 + $0x20] sm:$0xff]
    %v64 = vld [vmem:[#allocation2 + $0x28] sm:$0xff]
    %v65 = vld [vmem:[#allocation2 + $0x30] sm:$0xff]
    %v66 = vld [vmem:[#allocation2 + $0x38] sm:$0xff]
    %v67 = vld [vmem:[#allocation2 + $0x40] sm:$0xff]
    %v68 = vld [vmem:[#allocation2 + $0x48] sm:$0xff]
    %v69 = vld [vmem:[#allocation2 + $0x50] sm:$0xff]
    %v70 = vld [vmem:[#allocation2 + $0x58] sm:$0xff]
    %v71 = vld [vmem:[#allocation2 + $0x60] sm:$0xff]
    %v72 = vld [vmem:[#allocation2 + $0x68] sm:$0xff]
    %v73 = vld [vmem:[#allocation5] sm:$0xff]
    %v74 = vld [vmem:[#allocation5 + $0x8] sm:$0xff]
    %v75 = vld [vmem:[#allocation5 + $0x10] sm:$0xff]
    %v76 = vld [vmem:[#allocation5 + $0x18] sm:$0xff]
    %v77 = vld [vmem:[#allocation5 + $0x20] sm:$0xff]
    %v78 = vld [vmem:[#allocation5 + $0x28] sm:$0xff]
    %v79 = vld [vmem:[#allocation5 + $0x30] sm:$0xff]
    %v80 = vld [vmem:[#allocation5 + $0x38] sm:$0xff]
    %v81 = vld [vmem:[#allocation5 + $0x40] sm:$0xff]
    %v82 = vld [vmem:[#allocation5 + $0x48] sm:$0xff]
    %v83 = vld [vmem:[#allocation5 + $0x50] sm:$0xff]
    %v84 = vld [vmem:[#allocation5 + $0x58] sm:$0xff]
    %v85 = vld [vmem:[#allocation5 + $0x60] sm:$0xff]
    %v86 = vld [vmem:[#allocation5 + $0x68] sm:$0xff]
    %v87 = vld [vmem:[#allocation5 + $0x70] sm:$0xff]
    %v88 = vld [vmem:[#allocation5 + $0x78] sm:$0xff]
    %89 = vmatprep.subr.mxu0 0.0
    %90 = vmatpush1.msra.mxu0 %v73
    %91 = vmatprep.subr.mxu0 0.0
    %92 = vmatpush1.msra.mxu0 %v74
    %93 = vmatprep.subr.mxu0 0.0
    %94 = vmatpush1.msra.mxu0 %v75
    %95 = vmatprep.subr.mxu0 0.0
    %96 = vmatpush1.msra.mxu0 %v76
    %97 = vmatprep.subr.mxu0 0.0
    %98 = vmatpush1.msra.mxu0 %v77
    %99 = vmatprep.subr.mxu0 0.0
    %100 = vmatpush1.msra.mxu0 %v78
    %101 = vmatprep.subr.mxu0 0.0
    %102 = vmatpush1.msra.mxu0 %v79
    %103 = vmatprep.subr.mxu0 0.0
    %104 = vmatpush1.msra.mxu0 %v80
    %105 = vmatprep.subr.mxu0 0.0
    %106 = vmatpush1.msra.mxu0 %v81
    %107 = vmatprep.subr.mxu0 0.0
    %108 = vmatpush1.msra.mxu0 %v82
    %109 = vmatprep.subr.mxu0 0.0
    %110 = vmatpush1.msra.mxu0 %v83
    %111 = vmatprep.subr.mxu0 0.0
    %112 = vmatpush1.msra.mxu0 %v84
    %113 = vmatprep.subr.mxu0 0.0
    %114 = vmatpush1.msra.mxu0 %v85
    %115 = vmatprep.subr.mxu0 0.0
    %116 = vmatpush1.msra.mxu0 %v86
    %117 = vmatprep.subr.mxu0 0.0
    %118 = vmatpush1.msra.mxu0 %v87
    %119 = vmatprep.subr.mxu0 0.0
    %120 = vmatpush1.msra.mxu0 %v88
    %121 = vmatprep.subr.mxu0 0.0
    %122 = vmatpush1.msra.mxu0 0.0
    %123 = vmatprep.subr.mxu0 0.0
    %124 = vmatpush1.msra.mxu0 0.0
    %125 = vmatprep.subr.mxu0 0.0
    %126 = vmatpush1.msra.mxu0 0.0
    %127 = vmatprep.subr.mxu0 0.0
    %128 = vmatpush1.msra.mxu0 0.0
    %129 = vmatprep.subr.mxu0 0.0
    %130 = vmatpush1.msra.mxu0 0.0
    %131 = vmatprep.subr.mxu0 0.0
    %132 = vmatpush1.msra.mxu0 0.0
    %133 = vmatprep.subr.mxu0 0.0
    %134 = vmatpush1.msra.mxu0 0.0
    %135 = vmatprep.subr.mxu0 0.0
    %136 = vmatpush1.msra.mxu0 0.0
    %137 = vmatprep.subr.mxu0 0.0
    %138 = vmatpush1.msra.mxu0 0.0
    %139 = vmatprep.subr.mxu0 0.0
    %140 = vmatpush1.msra.mxu0 0.0
    %141 = vmatprep.subr.mxu0 0.0
    %142 = vmatpush1.msra.mxu0 0.0
    %143 = vmatprep.subr.mxu0 0.0
    %144 = vmatpush1.msra.mxu0 0.0
    %145 = vmatprep.subr.mxu0 0.0
    %146 = vmatpush1.msra.mxu0 0.0
    %147 = vmatprep.subr.mxu0 0.0
    %148 = vmatpush1.msra.mxu0 0.0
    %149 = vmatprep.subr.mxu0 0.0
    %150 = vmatpush1.msra.mxu0 0.0
    %151 = vmatprep.subr.mxu0 0.0
    %152 = vmatpush1.msra.mxu0 0.0
    %153 = vmatprep.mubr.f32.mxu0 0.0
    %154 = vmatmul.mubr.f32.gmra.mrb[0].mxu0 %v59
    %v155 = vpop.f32.mrb[0].mxu0
    %v156 = vadd.f32 0.0, %v155
    %v157 = vpop.f32.mrb[0].mxu0
    %158 = vmatprep.mubr.f32.mxu0 0.0
    %159 = vmatmul.mubr.f32.gmra.mrb[0].mxu0 %v60
    %v160 = vpop.f32.mrb[0].mxu0
    %v161 = vadd.f32 0.0, %v160
    %v162 = vpop.f32.mrb[0].mxu0
    %163 = vmatprep.mubr.f32.mxu0 0.0
    %164 = vmatmul.mubr.f32.gmra.mrb[0].mxu0 %v61
    %v165 = vpop.f32.mrb[0].mxu0
    %v166 = vadd.f32 0.0, %v165
    %v167 = vpop.f32.mrb[0].mxu0
    %168 = vmatprep.mubr.f32.mxu0 0.0
    %169 = vmatmul.mubr.f32.gmra.mrb[0].mxu0 %v62
    %v170 = vpop.f32.mrb[0].mxu0
    %v171 = vadd.f32 0.0, %v170
    %v172 = vpop.f32.mrb[0].mxu0
    %173 = vmatprep.mubr.f32.mxu0 0.0
    %174 = vmatmul.mubr.f32.gmra.mrb[0].mxu0 %v63
    %v175 = vpop.f32.mrb[0].mxu0
    %v176 = vadd.f32 0.0, %v175
    %v177 = vpop.f32.mrb[0].mxu0
    %178 = vmatprep.mubr.f32.mxu0 0.0
    %179 = vmatmul.mubr.f32.gmra.mrb[0].mxu0 %v64
    %v180 = vpop.f32.mrb[0].mxu0
    %v181 = vadd.f32 0.0, %v180
    %v182 = vpop.f32.mrb[0].mxu0
    %183 = vmatprep.mubr.f32.mxu0 0.0
    %184 = vmatmul.mubr.f32.gmra.mrb[0].mxu0 %v65
    %v185 = vpop.f32.mrb[0].mxu0
    %v186 = vadd.f32 0.0, %v185
    %v187 = vpop.f32.mrb[0].mxu0
    %188 = vmatprep.mubr.f32.mxu0 0.0
    %189 = vmatmul.mubr.f32.gmra.mrb[0].mxu0 %v66
    %v190 = vpop.f32.mrb[0].mxu0
    %v191 = vadd.f32 0.0, %v190
    %v192 = vpop.f32.mrb[0].mxu0
    %193 = vmatprep.mubr.f32.mxu0 0.0
    %194 = vmatmul.mubr.f32.gmra.mrb[0].mxu0 %v67
    %v195 = vpop.f32.mrb[0].mxu0
    %v196 = vadd.f32 0.0, %v195
    %v197 = vpop.f32.mrb[0].mxu0
    %198 = vmatprep.mubr.f32.mxu0 0.0
    %199 = vmatmul.mubr.f32.gmra.mrb[0].mxu0 %v68
    %v200 = vpop.f32.mrb[0].mxu0
    %v201 = vadd.f32 0.0, %v200
    %v202 = vpop.f32.mrb[0].mxu0
    %203 = vmatprep.mubr.f32.mxu0 0.0
    %204 = vmatmul.mubr.f32.gmra.mrb[0].mxu0 %v69
    %v205 = vpop.f32.mrb[0].mxu0
    %v206 = vadd.f32 0.0, %v205
    %v207 = vpop.f32.mrb[0].mxu0
    %208 = vmatprep.mubr.f32.mxu0 0.0
    %209 = vmatmul.mubr.f32.gmra.mrb[0].mxu0 %v70
    %v210 = vpop.f32.mrb[0].mxu0
    %v211 = vadd.f32 0.0, %v210
    %v212 = vpop.f32.mrb[0].mxu0
    %213 = vmatprep.mubr.f32.mxu0 0.0
    %214 = vmatmul.mubr.f32.gmra.mrb[0].mxu0 %v71
    %v215 = vpop.f32.mrb[0].mxu0
    %v216 = vadd.f32 0.0, %v215
    %v217 = vpop.f32.mrb[0].mxu0
    %218 = vmatprep.mubr.f32.mxu0 0.0
    %219 = vmatmul.mubr.f32.gmra.mrb[0].mxu0 %v72
    %v220 = vpop.f32.mrb[0].mxu0
    %v221 = vadd.f32 0.0, %v220
    %v222 = vpop.f32.mrb[0].mxu0
    %223 = vdwg.mxu0
    %v224 = vmax.f32 %v156, 0.0
    %v225 = vmax.f32 %v161, 0.0
    %v226 = vmax.f32 %v166, 0.0
    %v227 = vmax.f32 %v171, 0.0
    %v228 = vmax.f32 %v176, 0.0
    %v229 = vmax.f32 %v181, 0.0
    %v230 = vmax.f32 %v186, 0.0
    %v231 = vmax.f32 %v191, 0.0
    %v232 = vmax.f32 %v196, 0.0
    %v233 = vmax.f32 %v201, 0.0
    %v234 = vmax.f32 %v206, 0.0
    %v235 = vmax.f32 %v211, 0.0
    %v236 = vmax.f32 %v216, 0.0
    %v237 = vmax.f32 %v221, 0.0
    %238 = vst [vmem:[#allocation8] sm:$0xff] %v224
    %239 = vst [vmem:[#allocation8 + $0x8] sm:$0xff] %v225
    %240 = vst [vmem:[#allocation8 + $0x10] sm:$0xff] %v226
    %241 = vst [vmem:[#allocation8 + $0x18] sm:$0xff] %v227
    %242 = vst [vmem:[#allocation8 + $0x20] sm:$0xff] %v228
    %243 = vst [vmem:[#allocation8 + $0x28] sm:$0xff] %v229
    %244 = vst [vmem:[#allocation8 + $0x30] sm:$0xff] %v230
    %245 = vst [vmem:[#allocation8 + $0x38] sm:$0xff] %v231
    %246 = vst [vmem:[#allocation8 + $0x40] sm:$0xff] %v232
    %247 = vst [vmem:[#allocation8 + $0x48] sm:$0xff] %v233
    %248 = vst [vmem:[#allocation8 + $0x50] sm:$0xff] %v234
    %249 = vst [vmem:[#allocation8 + $0x58] sm:$0xff] %v235
    %250 = vst [vmem:[#allocation8 + $0x60] sm:$0xff] %v236
    %251 = vst [vmem:[#allocation8 + $0x68] sm:$0xff] %v237
    %v252 = vld [vmem:[#allocation7] sm:$0xff]
    %v253 = vld [vmem:[#allocation7 + $0x8] sm:$0xff]
    %v254 = vld [vmem:[#allocation7 + $0x10] sm:$0xff]
    %v255 = vld [vmem:[#allocation7 + $0x18] sm:$0xff]
    %v256 = vld [vmem:[#allocation7 + $0x20] sm:$0xff]
    %v257 = vld [vmem:[#allocation7 + $0x28] sm:$0xff]
    %v258 = vld [vmem:[#allocation7 + $0x30] sm:$0xff]
    %v259 = vld [vmem:[#allocation7 + $0x38] sm:$0xff]
    %v260 = vld [vmem:[#allocation7 + $0x40] sm:$0xff]
    %v261 = vld [vmem:[#allocation7 + $0x48] sm:$0xff]
    %v262 = vld [vmem:[#allocation7 + $0x50] sm:$0xff]
    %v263 = vld [vmem:[#allocation7 + $0x58] sm:$0xff]
    %v264 = vld [vmem:[#allocation7 + $0x60] sm:$0xff]
    %v265 = vld [vmem:[#allocation7 + $0x68] sm:$0xff]
    %v266 = vld [vmem:[#allocation7 + $0x70] sm:$0xff]
    %v267 = vld [vmem:[#allocation7 + $0x78] sm:$0xff]
    %268 = vmatprep.subr.mxu0 0.0
    %269 = vmatpush1.msra.mxu0 %v252
    %270 = vmatprep.subr.mxu0 0.0
    %271 = vmatpush1.msra.mxu0 %v253
    %272 = vmatprep.subr.mxu0 0.0
    %273 = vmatpush1.msra.mxu0 %v254
    %274 = vmatprep.subr.mxu0 0.0
    %275 = vmatpush1.msra.mxu0 %v255
    %276 = vmatprep.subr.mxu0 0.0
    %277 = vmatpush1.msra.mxu0 %v256
    %278 = vmatprep.subr.mxu0 0.0
    %279 = vmatpush1.msra.mxu0 %v257
    %280 = vmatprep.subr.mxu0 0.0
    %281 = vmatpush1.msra.mxu0 %v258
    %282 = vmatprep.subr.mxu0 0.0
    %283 = vmatpush1.msra.mxu0 %v259
    %284 = vmatprep.subr.mxu0 0.0
    %285 = vmatpush1.msra.mxu0 %v260
    %286 = vmatprep.subr.mxu0 0.0
    %287 = vmatpush1.msra.mxu0 %v261
    %288 = vmatprep.subr.mxu0 0.0
    %289 = vmatpush1.msra.mxu0 %v262
    %290 = vmatprep.subr.mxu0 0.0
    %291 = vmatpush1.msra.mxu0 %v263
    %292 = vmatprep.subr.mxu0 0.0
    %293 = vmatpush1.msra.mxu0 %v264
    %294 = vmatprep.subr.mxu0 0.0
    %295 = vmatpush1.msra.mxu0 %v265
    %296 = vmatprep.subr.mxu0 0.0
    %297 = vmatpush1.msra.mxu0 %v266
    %298 = vmatprep.subr.mxu0 0.0
    %299 = vmatpush1.msra.mxu0 %v267
    %300 = vmatprep.subr.mxu0 0.0
    %301 = vmatpush1.msra.mxu0 0.0
    %302 = vmatprep.subr.mxu0 0.0
    %303 = vmatpush1.msra.mxu0 0.0
    %304 = vmatprep.subr.mxu0 0.0
    %305 = vmatpush1.msra.mxu0 0.0
    %306 = vmatprep.subr.mxu0 0.0
    %307 = vmatpush1.msra.mxu0 0.0
    %308 = vmatprep.subr.mxu0 0.0
    %309 = vmatpush1.msra.mxu0 0.0
    %310 = vmatprep.subr.mxu0 0.0
    %311 = vmatpush1.msra.mxu0 0.0
    %312 = vmatprep.subr.mxu0 0.0
    %313 = vmatpush1.msra.mxu0 0.0
    %314 = vmatprep.subr.mxu0 0.0
    %315 = vmatpush1.msra.mxu0 0.0
    %316 = vmatprep.subr.mxu0 0.0
    %317 = vmatpush1.msra.mxu0 0.0
    %318 = vmatprep.subr.mxu0 0.0
    %319 = vmatpush1.msra.mxu0 0.0
    %320 = vmatprep.subr.mxu0 0.0
    %321 = vmatpush1.msra.mxu0 0.0
    %322 = vmatprep.subr.mxu0 0.0
    %323 = vmatpush1.msra.mxu0 0.0
    %324 = vmatprep.subr.mxu0 0.0
    %325 = vmatpush1.msra.mxu0 0.0
    %326 = vmatprep.subr.mxu0 0.0
    %327 = vmatpush1.msra.mxu0 0.0
    %328 = vmatprep.subr.mxu0 0.0
    %329 = vmatpush1.msra.mxu0 0.0
    %330 = vmatprep.subr.mxu0 0.0
    %331 = vmatpush1.msra.mxu0 0.0
    %332 = vmatprep.mubr.f32.mxu0 0.0
    %333 = vmatmul.mubr.f32.gmra.mrb[0].mxu0 %v224
    %v334 = vpop.f32.mrb[0].mxu0
    %v335 = vadd.f32 0.0, %v334
    %v336 = vpop.f32.mrb[0].mxu0
    %337 = vmatprep.mubr.f32.mxu0 0.0
    %338 = vmatmul.mubr.f32.gmra.mrb[0].mxu0 %v225
    %v339 = vpop.f32.mrb[0].mxu0
    %v340 = vadd.f32 0.0, %v339
    %v341 = vpop.f32.mrb[0].mxu0
    %342 = vmatprep.mubr.f32.mxu0 0.0
    %343 = vmatmul.mubr.f32.gmra.mrb[0].mxu0 %v226
    %v344 = vpop.f32.mrb[0].mxu0
    %v345 = vadd.f32 0.0, %v344
    %v346 = vpop.f32.mrb[0].mxu0
    %347 = vmatprep.mubr.f32.mxu0 0.0
    %348 = vmatmul.mubr.f32.gmra.mrb[0].mxu0 %v227
    %v349 = vpop.f32.mrb[0].mxu0
    %v350 = vadd.f32 0.0, %v349
    %v351 = vpop.f32.mrb[0].mxu0
    %352 = vmatprep.mubr.f32.mxu0 0.0
    %353 = vmatmul.mubr.f32.gmra.mrb[0].mxu0 %v228
    %v354 = vpop.f32.mrb[0].mxu0
    %v355 = vadd.f32 0.0, %v354
    %v356 = vpop.f32.mrb[0].mxu0
    %357 = vmatprep.mubr.f32.mxu0 0.0
    %358 = vmatmul.mubr.f32.gmra.mrb[0].mxu0 %v229
    %v359 = vpop.f32.mrb[0].mxu0
    %v360 = vadd.f32 0.0, %v359
    %v361 = vpop.f32.mrb[0].mxu0
    %362 = vmatprep.mubr.f32.mxu0 0.0
    %363 = vmatmul.mubr.f32.gmra.mrb[0].mxu0 %v230
    %v364 = vpop.f32.mrb[0].mxu0
    %v365 = vadd.f32 0.0, %v364
    %v366 = vpop.f32.mrb[0].mxu0
    %367 = vmatprep.mubr.f32.mxu0 0.0
    %368 = vmatmul.mubr.f32.gmra.mrb[0].mxu0 %v231
    %v369 = vpop.f32.mrb[0].mxu0
    %v370 = vadd.f32 0.0, %v369
    %v371 = vpop.f32.mrb[0].mxu0
    %372 = vmatprep.mubr.f32.mxu0 0.0
    %373 = vmatmul.mubr.f32.gmra.mrb[0].mxu0 %v232
    %v374 = vpop.f32.mrb[0].mxu0
    %v375 = vadd.f32 0.0, %v374
    %v376 = vpop.f32.mrb[0].mxu0
    %377 = vmatprep.mubr.f32.mxu0 0.0
    %378 = vmatmul.mubr.f32.gmra.mrb[0].mxu0 %v233
    %v379 = vpop.f32.mrb[0].mxu0
    %v380 = vadd.f32 0.0, %v379
    %v381 = vpop.f32.mrb[0].mxu0
    %382 = vmatprep.mubr.f32.mxu0 0.0
    %383 = vmatmul.mubr.f32.gmra.mrb[0].mxu0 %v234
    %v384 = vpop.f32.mrb[0].mxu0
    %v385 = vadd.f32 0.0, %v384
    %v386 = vpop.f32.mrb[0].mxu0
    %387 = vmatprep.mubr.f32.mxu0 0.0
    %388 = vmatmul.mubr.f32.gmra.mrb[0].mxu0 %v235
    %v389 = vpop.f32.mrb[0].mxu0
    %v390 = vadd.f32 0.0, %v389
    %v391 = vpop.f32.mrb[0].mxu0
    %392 = vmatprep.mubr.f32.mxu0 0.0
    %393 = vmatmul.mubr.f32.gmra.mrb[0].mxu0 %v236
    %v394 = vpop.f32.mrb[0].mxu0
    %v395 = vadd.f32 0.0, %v394
    %v396 = vpop.f32.mrb[0].mxu0
    %397 = vmatprep.mubr.f32.mxu0 0.0
    %398 = vmatmul.mubr.f32.gmra.mrb[0].mxu0 %v237
    %v399 = vpop.f32.mrb[0].mxu0
    %v400 = vadd.f32 0.0, %v399
    %v401 = vpop.f32.mrb[0].mxu0
    %402 = vdwg.mxu0
    %v403 = vmul.f32 %v224, %v224
    %v404 = vmul.f32 %v225, %v225
    %v405 = vmul.f32 %v226, %v226
    %v406 = vmul.f32 %v227, %v227
    %v407 = vmul.f32 %v228, %v228
    %v408 = vmul.f32 %v229, %v229
    %v409 = vmul.f32 %v230, %v230
    %v410 = vmul.f32 %v231, %v231
    %v411 = vmul.f32 %v232, %v232
    %v412 = vmul.f32 %v233, %v233
    %v413 = vmul.f32 %v234, %v234
    %v414 = vmul.f32 %v235, %v235
    %v415 = vmul.f32 %v236, %v236
    %v416 = vmul.f32 %v237, %v237
    %417 = vadd.xlane.f32.xlu0 %v403
    %v418 = vpop.xlane.xlu0 %417
    %419 = vadd.xlane.f32.xlu0 %v404
    %v420 = vpop.xlane.xlu0 %419
    %421 = vadd.xlane.f32.xlu0 %v405
    %v422 = vpop.xlane.xlu0 %421
    %423 = vadd.xlane.f32.xlu0 %v406
    %v424 = vpop.xlane.xlu0 %423
    %425 = vadd.xlane.f32.xlu0 %v407
    %v426 = vpop.xlane.xlu0 %425
    %427 = vadd.xlane.f32.xlu0 %v408
    %v428 = vpop.xlane.xlu0 %427
    %429 = vadd.xlane.f32.xlu0 %v409
    %v430 = vpop.xlane.xlu0 %429
    %431 = vadd.xlane.f32.xlu0 %v410
    %v432 = vpop.xlane.xlu0 %431
    %433 = vadd.xlane.f32.xlu0 %v411
    %v434 = vpop.xlane.xlu0 %433
    %435 = vadd.xlane.f32.xlu0 %v412
    %v436 = vpop.xlane.xlu0 %435
    %437 = vadd.xlane.f32.xlu0 %v413
    %v438 = vpop.xlane.xlu0 %437
    %439 = vadd.xlane.f32.xlu0 %v414
    %v440 = vpop.xlane.xlu0 %439
    %441 = vadd.xlane.f32.xlu0 %v415
    %v442 = vpop.xlane.xlu0 %441
    %443 = vadd.xlane.f32.xlu0 %v416
    %v444 = vpop.xlane.xlu0 %443
    %v445 = vrsqrt.pop %v418
    %v446 = vmul.f32 %v418, %v445
    %vm447 = vcmp.eq.f32.partialorder %v418, inf
    %v448 = vsel %vm447, %v418, %v446
    %vm449 = vcmp.eq.f32.partialorder %v418, 0.0
    %v450 = vand.u32 %v418, 2147483648
    %v451 = vsel %vm449, %v450, %v448
    %v452 = vrsqrt.pop %v420
    %v453 = vmul.f32 %v420, %v452
    %vm454 = vcmp.eq.f32.partialorder %v420, inf
    %v455 = vsel %vm454, %v420, %v453
    %vm456 = vcmp.eq.f32.partialorder %v420, 0.0
    %v457 = vand.u32 %v420, 2147483648
    %v458 = vsel %vm456, %v457, %v455
    %v459 = vrsqrt.pop %v422
    %v460 = vmul.f32 %v422, %v459
    %vm461 = vcmp.eq.f32.partialorder %v422, inf
    %v462 = vsel %vm461, %v422, %v460
    %vm463 = vcmp.eq.f32.partialorder %v422, 0.0
    %v464 = vand.u32 %v422, 2147483648
    %v465 = vsel %vm463, %v464, %v462
    %v466 = vrsqrt.pop %v424
    %v467 = vmul.f32 %v424, %v466
    %vm468 = vcmp.eq.f32.partialorder %v424, inf
    %v469 = vsel %vm468, %v424, %v467
    %vm470 = vcmp.eq.f32.partialorder %v424, 0.0
    %v471 = vand.u32 %v424, 2147483648
    %v472 = vsel %vm470, %v471, %v469
    %v473 = vrsqrt.pop %v426
    %v474 = vmul.f32 %v426, %v473
    %vm475 = vcmp.eq.f32.partialorder %v426, inf
    %v476 = vsel %vm475, %v426, %v474
    %vm477 = vcmp.eq.f32.partialorder %v426, 0.0
    %v478 = vand.u32 %v426, 2147483648
    %v479 = vsel %vm477, %v478, %v476
    %v480 = vrsqrt.pop %v428
    %v481 = vmul.f32 %v428, %v480
    %vm482 = vcmp.eq.f32.partialorder %v428, inf
    %v483 = vsel %vm482, %v428, %v481
    %vm484 = vcmp.eq.f32.partialorder %v428, 0.0
    %v485 = vand.u32 %v428, 2147483648
    %v486 = vsel %vm484, %v485, %v483
    %v487 = vrsqrt.pop %v430
    %v488 = vmul.f32 %v430, %v487
    %vm489 = vcmp.eq.f32.partialorder %v430, inf
    %v490 = vsel %vm489, %v430, %v488
    %vm491 = vcmp.eq.f32.partialorder %v430, 0.0
    %v492 = vand.u32 %v430, 2147483648
    %v493 = vsel %vm491, %v492, %v490
    %v494 = vrsqrt.pop %v432
    %v495 = vmul.f32 %v432, %v494
    %vm496 = vcmp.eq.f32.partialorder %v432, inf
    %v497 = vsel %vm496, %v432, %v495
    %vm498 = vcmp.eq.f32.partialorder %v432, 0.0
    %v499 = vand.u32 %v432, 2147483648
    %v500 = vsel %vm498, %v499, %v497
    %v501 = vrsqrt.pop %v434
    %v502 = vmul.f32 %v434, %v501
    %vm503 = vcmp.eq.f32.partialorder %v434, inf
    %v504 = vsel %vm503, %v434, %v502
    %vm505 = vcmp.eq.f32.partialorder %v434, 0.0
    %v506 = vand.u32 %v434, 2147483648
    %v507 = vsel %vm505, %v506, %v504
    %v508 = vrsqrt.pop %v436
    %v509 = vmul.f32 %v436, %v508
    %vm510 = vcmp.eq.f32.partialorder %v436, inf
    %v511 = vsel %vm510, %v436, %v509
    %vm512 = vcmp.eq.f32.partialorder %v436, 0.0
    %v513 = vand.u32 %v436, 2147483648
    %v514 = vsel %vm512, %v513, %v511
    %v515 = vrsqrt.pop %v438
    %v516 = vmul.f32 %v438, %v515
    %vm517 = vcmp.eq.f32.partialorder %v438, inf
    %v518 = vsel %vm517, %v438, %v516
    %vm519 = vcmp.eq.f32.partialorder %v438, 0.0
    %v520 = vand.u32 %v438, 2147483648
    %v521 = vsel %vm519, %v520, %v518
    %v522 = vrsqrt.pop %v440
    %v523 = vmul.f32 %v440, %v522
    %vm524 = vcmp.eq.f32.partialorder %v440, inf
    %v525 = vsel %vm524, %v440, %v523
    %vm526 = vcmp.eq.f32.partialorder %v440, 0.0
    %v527 = vand.u32 %v440, 2147483648
    %v528 = vsel %vm526, %v527, %v525
    %v529 = vrsqrt.pop %v442
    %v530 = vmul.f32 %v442, %v529
    %vm531 = vcmp.eq.f32.partialorder %v442, inf
    %v532 = vsel %vm531, %v442, %v530
    %vm533 = vcmp.eq.f32.partialorder %v442, 0.0
    %v534 = vand.u32 %v442, 2147483648
    %v535 = vsel %vm533, %v534, %v532
    %v536 = vrsqrt.pop %v444
    %v537 = vmul.f32 %v444, %v536
    %vm538 = vcmp.eq.f32.partialorder %v444, inf
    %v539 = vsel %vm538, %v444, %v537
    %vm540 = vcmp.eq.f32.partialorder %v444, 0.0
    %v541 = vand.u32 %v444, 2147483648
    %v542 = vsel %vm540, %v541, %v539
    %v543 = vmul.f32 %v252, %v252
    %v544 = vmul.f32 %v253, %v253
    %v545 = vmul.f32 %v254, %v254
    %v546 = vmul.f32 %v255, %v255
    %v547 = vmul.f32 %v256, %v256
    %v548 = vmul.f32 %v257, %v257
    %v549 = vmul.f32 %v258, %v258
    %v550 = vmul.f32 %v259, %v259
    %v551 = vmul.f32 %v260, %v260
    %v552 = vmul.f32 %v261, %v261
    %v553 = vmul.f32 %v262, %v262
    %v554 = vmul.f32 %v263, %v263
    %v555 = vmul.f32 %v264, %v264
    %v556 = vmul.f32 %v265, %v265
    %v557 = vmul.f32 %v266, %v266
    %v558 = vmul.f32 %v267, %v267
    %v559 = vadd.f32 %v543, %v544
    %v560 = vadd.f32 %v559, %v545
    %v561 = vadd.f32 %v560, %v546
    %v562 = vadd.f32 %v561, %v547
    %v563 = vadd.f32 %v562, %v548
    %v564 = vadd.f32 %v563, %v549
    %v565 = vadd.f32 %v564, %v550
    %v566 = vadd.f32 %v565, %v551
    %v567 = vadd.f32 %v566, %v552
    %v568 = vadd.f32 %v567, %v553
    %v569 = vadd.f32 %v568, %v554
    %v570 = vadd.f32 %v569, %v555
    %v571 = vadd.f32 %v570, %v556
    %v572 = vadd.f32 %v571, %v557
    %v573 = vadd.f32 %v572, %v558
    %v574 = vrot.slane %v573, 4
    %v575 = vadd.f32 %v573, %v574
    %v576 = vrot.slane %v575, 2
    %v577 = vadd.f32 %v575, %v576
    %v578 = vrot.slane %v577, 1
    %v579 = vadd.f32 %v577, %v578
    %v580 = vrsqrt.pop %v579
    %v581 = vmul.f32 %v579, %v580
    %vm582 = vcmp.eq.f32.partialorder %v579, inf
    %v583 = vsel %vm582, %v579, %v581
    %vm584 = vcmp.eq.f32.partialorder %v579, 0.0
    %v585 = vand.u32 %v579, 2147483648
    %v586 = vsel %vm584, %v585, %v583
    %v587 = vmul.f32 %v451, %v586
    %v588 = vmul.f32 %v458, %v586
    %v589 = vmul.f32 %v465, %v586
    %v590 = vmul.f32 %v472, %v586
    %v591 = vmul.f32 %v479, %v586
    %v592 = vmul.f32 %v486, %v586
    %v593 = vmul.f32 %v493, %v586
    %v594 = vmul.f32 %v500, %v586
    %v595 = vmul.f32 %v507, %v586
    %v596 = vmul.f32 %v514, %v586
    %v597 = vmul.f32 %v521, %v586
    %v598 = vmul.f32 %v528, %v586
    %v599 = vmul.f32 %v535, %v586
    %v600 = vmul.f32 %v542, %v586
    %v601 = vmax.f32 %v587, 1e-08
    %v602 = vmax.f32 %v588, 1e-08
    %v603 = vmax.f32 %v589, 1e-08
    %v604 = vmax.f32 %v590, 1e-08
    %v605 = vmax.f32 %v591, 1e-08
    %v606 = vmax.f32 %v592, 1e-08
    %v607 = vmax.f32 %v593, 1e-08
    %v608 = vmax.f32 %v594, 1e-08
    %v609 = vmax.f32 %v595, 1e-08
    %v610 = vmax.f32 %v596, 1e-08
    %v611 = vmax.f32 %v597, 1e-08
    %v612 = vmax.f32 %v598, 1e-08
    %v613 = vmax.f32 %v599, 1e-08
    %v614 = vmax.f32 %v600, 1e-08
    %v615 = vrcp.pop %v601
    %v616 = vrcp.pop %v602
    %v617 = vrcp.pop %v603
    %v618 = vrcp.pop %v604
    %v619 = vrcp.pop %v605
    %v620 = vrcp.pop %v606
    %v621 = vrcp.pop %v607
    %v622 = vrcp.pop %v608
    %v623 = vrcp.pop %v609
    %v624 = vrcp.pop %v610
    %v625 = vrcp.pop %v611
    %v626 = vrcp.pop %v612
    %v627 = vrcp.pop %v613
    %v628 = vrcp.pop %v614
    %v629 = vmul.f32 %v335, %v615
    %v630 = vmul.f32 %v340, %v616
    %v631 = vmul.f32 %v345, %v617
    %v632 = vmul.f32 %v350, %v618
    %v633 = vmul.f32 %v355, %v619
    %v634 = vmul.f32 %v360, %v620
    %v635 = vmul.f32 %v365, %v621
    %v636 = vmul.f32 %v370, %v622
    %v637 = vmul.f32 %v375, %v623
    %v638 = vmul.f32 %v380, %v624
    %v639 = vmul.f32 %v385, %v625
    %v640 = vmul.f32 %v390, %v626
    %v641 = vmul.f32 %v395, %v627
    %v642 = vmul.f32 %v400, %v628
    %643 = vst [vmem:[#allocation9] sm:$0xff] %v629
    %644 = vst [vmem:[#allocation9 + $0x8] sm:$0xff] %v630
    %645 = vst [vmem:[#allocation9 + $0x10] sm:$0xff] %v631
    %646 = vst [vmem:[#allocation9 + $0x18] sm:$0xff] %v632
    %647 = vst [vmem:[#allocation9 + $0x20] sm:$0xff] %v633
    %648 = vst [vmem:[#allocation9 + $0x28] sm:$0xff] %v634
    %649 = vst [vmem:[#allocation9 + $0x30] sm:$0xff] %v635
    %650 = vst [vmem:[#allocation9 + $0x38] sm:$0xff] %v636
    %651 = vst [vmem:[#allocation9 + $0x40] sm:$0xff] %v637
    %652 = vst [vmem:[#allocation9 + $0x48] sm:$0xff] %v638
    %653 = vst [vmem:[#allocation9 + $0x50] sm:$0xff] %v639
    %654 = vst [vmem:[#allocation9 + $0x58] sm:$0xff] %v640
    %655 = vst [vmem:[#allocation9 + $0x60] sm:$0xff] %v641
    %656 = vst [vmem:[#allocation9 + $0x68] sm:$0xff] %v642
    // Predicated region
    $region26: #{tpu_custom_call.1} parent=1 // pred_check
      _
    $region27: #{tpu_custom_call.1} parent=1 // pred_check_branch
      %658 = sbr.rel (0) target = $region29
    $region28: #{tpu_custom_call.1} parent=1 // pred_region
      %s660 = ssub.s32 1792, 1792
      %661 = vsyncadd [#allocation4], %s660
      %s662 = sshll.u32 [#allocation8], 4
      %s663 = int_to_ptr.vmem [resolvable:$true] %s662
      %668 = dma.vmem_to_hbm [thread:$0]  %s663, 1792, %s3, [#allocation4], 128, 128, 8
    $region29: #{tpu_custom_call.1} parent=1 // pred_fallthru
      _
    // Predicated region
    $region30: #{tpu_custom_call.1} parent=1 // pred_check
      _
    $region31: #{tpu_custom_call.1} parent=1 // pred_check_branch
      %670 = sbr.rel (0) target = $region33
    $region32: #{tpu_custom_call.1} parent=1 // pred_region
      %s672 = ssub.s32 1792, 1792
      %673 = vsyncadd [#allocation10], %s672
      %s674 = sshll.u32 [#allocation9], 4
      %s675 = int_to_ptr.vmem [resolvable:$true] %s674
      %680 = dma.vmem_to_hbm [thread:$0]  %s675, 1792, %s4, [#allocation10], 128, 128, 8
    $region33: #{tpu_custom_call.1} parent=1 // pred_fallthru
      _
    // Predicated region
    $region34: #{tpu_custom_call.1} parent=1 // pred_check
      _
    $region35: #{tpu_custom_call.1} parent=1 // pred_check_branch
      %682 = sbr.rel (0) target = $region37
    $region36: #{tpu_custom_call.1} parent=1 // pred_region
      %683 = dma.done [#allocation4], 1792
    $region37: #{tpu_custom_call.1} parent=1 // pred_fallthru
      _
    // Predicated region
    $region38: #{tpu_custom_call.1} parent=1 // pred_check
      _
    $region39: #{tpu_custom_call.1} parent=1 // pred_check_branch
      %685 = sbr.rel (0) target = $region41
    $region40: #{tpu_custom_call.1} parent=1 // pred_region
      %686 = dma.done [#allocation10], 1792
    $region41: #{tpu_custom_call.1} parent=1 // pred_fallthru
      _
    %687 = vsyncpa [#allocation3], 1
    %688 = vsyncpa [#allocation6], 1
    %689 = vsyncpa [#allocation4], 1
    %690 = vsyncpa [#allocation10], 1

</llo_original>
